<compile_context>
chip_gen: v6e
topology: v6e:2x2x1
jax: 0.10.0
libtpu: 0.0.40
codegen_flags: <defaults>
</compile_context>

<pallas_src>
import jax
import jax.numpy as jnp
from jax.experimental import pallas as pl
from jax.experimental.pallas import tpu as pltpu


def channel_gate_kernel(x_ref, w1t_ref, b1_ref, w2t_ref, b2_ref, o_ref):
    # x_ref : (TB, C, HW)  native dtype
    # w1t   : (C, Ch) f32   (Linear1 weight, pre-transposed: in x out)
    # b1    : (1, Ch) f32
    # w2t   : (Ch, C) f32   (Linear2 weight, pre-transposed)
    # b2    : (1, C)  f32
    x = x_ref[...]
    hw = x.shape[-1]

    # Global average / max pooling over the spatial (lane) axis, straight
    # from the native dtype; only the (TB, C) pooled results are f32.
    avg = jnp.sum(x, axis=-1, dtype=jnp.float32) * (1.0 / hw)    # (TB, C)
    mx = jnp.max(x, axis=-1).astype(jnp.float32)                 # (TB, C)

    # Shared 2-layer MLP, run per pooling branch (two tiny dot chains;
    # avoids sublane concat/slice relayout when 2*TB < 8 rows).
    def mlp(p):
        h = jnp.dot(p, w1t_ref[...], preferred_element_type=jnp.float32)
        h = jnp.maximum(h + b1_ref[...], 0.0)                    # ReLU
        return jnp.dot(h, w2t_ref[...],
                       preferred_element_type=jnp.float32) + b2_ref[...]

    scale = jax.nn.sigmoid(mlp(avg) + mlp(mx))                   # (TB, C) f32

    # Gated store: re-read the (already resident) input block and fuse the
    # f32 cast into the multiply -> reference numerics, and no f32
    # (TB, C, HW) temporary stays live across the MLP.
    o_ref[...] = (x_ref[...].astype(jnp.float32)
                  * scale[:, :, None]).astype(o_ref.dtype)


def _round_up(v, m):
    return -(-v // m) * m


def _vmem_capacity_bytes():
    try:
        return int(pltpu.get_tpu_info().vmem_capacity_bytes)
    except Exception:
        # Fallback: assume the smallest per-TC VMEM (v7x, 64 MiB).
        return 64 << 20


def _pick_batch_tile(batch, per_batch_block_bytes, fixed_bytes, budget_bytes):
    """Largest divisor of `batch` whose FULL pipelined footprint
    (input + output blocks, each double-buffered => 4x per-block bytes,
    plus resident weights) stays under `budget_bytes`; capped at batch//2
    when batch >= 2 so the grid has >= 2 parallel blocks (v7x megacore)."""
    usable = max(budget_bytes - fixed_bytes, 4 * per_batch_block_bytes)
    tb = max(1, int(usable // (4 * per_batch_block_bytes)))
    tb = min(tb, batch)
    if batch >= 2:
        tb = min(tb, batch // 2)
    tb = max(tb, 1)
    while batch % tb != 0:
        tb -= 1
    return tb


def channel_gate(x, w1, b1, w2, b2, *, batch_tile=None):
    """x: (B, C, H, W); weights follow torch.nn.Linear convention:
       w1: (C//r, C), b1: (C//r,), w2: (C, C//r), b2: (C,)."""
    B, C, H, W = x.shape
    HW = H * W
    Ch = w1.shape[0]

    x3 = x.reshape(B, C, HW)                          # free view; native dtype
    w1t = jnp.asarray(w1, jnp.float32).T              # (C, Ch)
    w2t = jnp.asarray(w2, jnp.float32).T              # (Ch, C)
    b1_2d = jnp.asarray(b1, jnp.float32).reshape(1, Ch)
    b2_2d = jnp.asarray(b2, jnp.float32).reshape(1, C)

    itemsize = jnp.dtype(x.dtype).itemsize
    # Per-batch VMEM bytes of one (1, C, HW) block, including (8,128) padding.
    per_batch_block_bytes = _round_up(C, 8) * _round_up(HW, 128) * itemsize
    # Resident weights/biases (double-buffered by the pipeline), padded, f32.
    weight_bytes = 2 * 4 * (
        _round_up(C, 8) * _round_up(Ch, 128)
        + 8 * _round_up(Ch, 128)
        + _round_up(Ch, 8) * _round_up(C, 128)
        + 8 * _round_up(C, 128))

    vmem_cap = _vmem_capacity_bytes()                 # 128 MiB v5e/v6e, 64 MiB v7x
    budget = vmem_cap // 2                            # leave pipeline headroom

    if batch_tile is None:
        batch_tile = _pick_batch_tile(B, per_batch_block_bytes,
                                      weight_bytes + (1 << 20), budget)
    assert B % batch_tile == 0, "batch_tile must divide B"
    n_blocks = B // batch_tile

    block_bytes = batch_tile * per_batch_block_bytes
    # in + out blocks, double-buffered, plus weights and slack.
    footprint = 4 * block_bytes + weight_bytes + (2 << 20)
    vmem_limit = int(min(max(footprint, 16 << 20), (vmem_cap * 85) // 100))

    cost = pl.CostEstimate(
        flops=int(8 * B * C * Ch + 3 * B * C * HW),
        transcendentals=int(B * C),
        bytes_accessed=int(2 * B * C * HW * itemsize + weight_bytes),
    )

    def const_spec(shape):
        return pl.BlockSpec(shape, lambda b: (0, 0))

    out3 = pl.pallas_call(
        channel_gate_kernel,
        out_shape=jax.ShapeDtypeStruct((B, C, HW), x.dtype),
        grid=(n_blocks,),
        in_specs=[
            pl.BlockSpec((batch_tile, C, HW), lambda b: (b, 0, 0)),
            const_spec((C, Ch)),
            const_spec((1, Ch)),
            const_spec((Ch, C)),
            const_spec((1, C)),
        ],
        out_specs=pl.BlockSpec((batch_tile, C, HW), lambda b: (b, 0, 0)),
        compiler_params=pltpu.CompilerParams(
            dimension_semantics=("parallel",),
            vmem_limit_bytes=vmem_limit,
        ),
        cost_estimate=cost,
    )(x3, w1t, b1_2d, w2t, b2_2d)

    return out3.reshape(B, C, H, W)


def channel_gate_ref(x, w1, b1, w2, b2):
    """Pure-JAX reference matching the PyTorch forward (pool_types=['avg','max'])."""
    B, C, H, W = x.shape
    xf = x.reshape(B, C, -1).astype(jnp.float32)
    avg_pool = jnp.mean(xf, axis=-1)
    max_pool = jnp.max(xf, axis=-1)

    def mlp(p):
        h = jnp.maximum(p @ w1.T + b1, 0.0)
        return h @ w2.T + b2

    att = mlp(avg_pool) + mlp(max_pool)
    scale = jax.nn.sigmoid(att)[:, :, None, None]
    return (x.astype(jnp.float32) * scale).astype(x.dtype)


if __name__ == "__main__":
    # Small shapes consistent with the module: gate_channels divisible by
    # reduction_ratio; HW = 16*16 = 256 keeps the lane axis dense (2 x 128).
    B, C, H, W = 2, 64, 16, 16
    reduction_ratio = 16
    Ch = C // reduction_ratio

    key = jax.random.PRNGKey(0)
    kx, k1, k2, k3, k4 = jax.random.split(key, 5)

    x = jax.random.normal(kx, (B, C, H, W), dtype=jnp.float32)

    # Deterministic synthetic parameters (nn.Linear shapes: (out, in)).
    w1 = jax.random.normal(k1, (Ch, C), dtype=jnp.float32) * (1.0 / jnp.sqrt(C))
    b1 = jax.random.normal(k2, (Ch,), dtype=jnp.float32) * 0.01
    w2 = jax.random.normal(k3, (C, Ch), dtype=jnp.float32) * (1.0 / jnp.sqrt(Ch))
    b2 = jax.random.normal(k4, (C,), dtype=jnp.float32) * 0.01

    ref = channel_gate_ref(x, w1, b1, w2, b2)

    # Auto-picked batch tile -> 2 pipelined / core-parallel blocks (B=2).
    out_auto = jax.block_until_ready(channel_gate(x, w1, b1, w2, b2))
    assert out_auto.shape == (B, C, H, W)
    assert jnp.allclose(out_auto, ref, atol=1e-5, rtol=1e-5), "mismatch (auto tile)"

    # Force the single-block path (whole batch in one grid step).
    out_one = jax.block_until_ready(channel_gate(x, w1, b1, w2, b2, batch_tile=B))
    assert jnp.allclose(out_one, ref, atol=1e-5, rtol=1e-5), "mismatch (batch_tile=B)"

    # bf16 I/O path: native-dtype pooling with f32 accumulation, bf16 store.
    x_bf16 = x.astype(jnp.bfloat16)
    ref_bf16 = channel_gate_ref(x_bf16, w1, b1, w2, b2)
    out_bf16 = jax.block_until_ready(channel_gate(x_bf16, w1, b1, w2, b2))
    assert out_bf16.dtype == jnp.bfloat16
    assert jnp.allclose(out_bf16.astype(jnp.float32), ref_bf16.astype(jnp.float32),
                        atol=1e-2, rtol=1e-2), "mismatch (bf16)"

    print("KERNEL_OK")
</pallas_src>

<mosaic_0001>
module attributes {stable_mosaic.version = 11 : i64} {
  func.func @channel_gate_kernel(%arg0: i32, %arg1: memref<1x64x256xf32, #tpu.memory_space<vmem>>, %arg2: memref<64x4xf32, #tpu.memory_space<vmem>>, %arg3: memref<1x4xf32, #tpu.memory_space<vmem>>, %arg4: memref<4x64xf32, #tpu.memory_space<vmem>>, %arg5: memref<1x64xf32, #tpu.memory_space<vmem>>, %arg6: memref<1x64x256xf32, #tpu.memory_space<vmem>>) attributes {dimension_semantics = [#tpu.dimension_semantics<parallel>], iteration_bounds = array<i64: 2>, scalar_prefetch = 0 : i64, scratch_operands = 0 : i64, tpu.core_type = #tpu.core_type<tc>, window_params = [{transform_indices = @transform_0, window_bounds = array<i64: 1, 64, 256>}, {pipeline_mode = #tpu.pipeline_mode<synchronous>, transform_indices = @transform_1, window_bounds = array<i64: 64, 4>}, {pipeline_mode = #tpu.pipeline_mode<synchronous>, transform_indices = @transform_2, window_bounds = array<i64: 1, 4>}, {pipeline_mode = #tpu.pipeline_mode<synchronous>, transform_indices = @transform_3, window_bounds = array<i64: 4, 64>}, {pipeline_mode = #tpu.pipeline_mode<synchronous>, transform_indices = @transform_4, window_bounds = array<i64: 1, 64>}, {transform_indices = @transform_5, window_bounds = array<i64: 1, 64, 256>}]} {
    %c0 = arith.constant 0 : index
    %c0_0 = arith.constant 0 : index
    %c0_1 = arith.constant 0 : index
    %0 = vector.load %arg1[%c0, %c0_0, %c0_1] : memref<1x64x256xf32, #tpu.memory_space<vmem>>, vector<1x64x256xf32>
    %cst = arith.constant dense<0.000000e+00> : vector<1x64xf32>
    %1 = vector.multi_reduction <add>, %0, %cst [2] : vector<1x64x256xf32> to vector<1x64xf32>
    %cst_2 = arith.constant 3.906250e-03 : f32
    %2 = vector.broadcast %cst_2 : f32 to vector<1x64xf32>
    %3 = arith.mulf %1, %2 : vector<1x64xf32>
    %cst_3 = arith.constant dense<0xFF800000> : vector<1x64xf32>
    %4 = vector.multi_reduction <maximumf>, %0, %cst_3 [2] : vector<1x64x256xf32> to vector<1x64xf32>
    %c0_4 = arith.constant 0 : index
    %c0_5 = arith.constant 0 : index
    %5 = vector.load %arg2[%c0_4, %c0_5] : memref<64x4xf32, #tpu.memory_space<vmem>>, vector<64x4xf32>
    %cst_6 = arith.constant dense<0.000000e+00> : vector<1x4xf32>
    %6 = tpu.matmul %3, %5, %cst_6 {dimension_numbers = #tpu.dot_dimension_numbers<[1], [0], [0], [1], [0, 0, 1, 1], [], []>} : vector<1x64xf32>, vector<64x4xf32>, vector<1x4xf32> -> vector<1x4xf32>
    %c0_7 = arith.constant 0 : index
    %c0_8 = arith.constant 0 : index
    %7 = vector.load %arg3[%c0_7, %c0_8] : memref<1x4xf32, #tpu.memory_space<vmem>>, vector<1x4xf32>
    %8 = arith.addf %6, %7 : vector<1x4xf32>
    %cst_9 = arith.constant 0.000000e+00 : f32
    %9 = vector.broadcast %cst_9 : f32 to vector<1x4xf32>
    %10 = arith.maximumf %8, %9 : vector<1x4xf32>
    %c0_10 = arith.constant 0 : index
    %c0_11 = arith.constant 0 : index
    %11 = vector.load %arg4[%c0_10, %c0_11] : memref<4x64xf32, #tpu.memory_space<vmem>>, vector<4x64xf32>
    %cst_12 = arith.constant dense<0.000000e+00> : vector<1x64xf32>
    %12 = tpu.matmul %10, %11, %cst_12 {dimension_numbers = #tpu.dot_dimension_numbers<[1], [0], [0], [1], [0, 0, 1, 1], [], []>} : vector<1x4xf32>, vector<4x64xf32>, vector<1x64xf32> -> vector<1x64xf32>
    %c0_13 = arith.constant 0 : index
    %c0_14 = arith.constant 0 : index
    %13 = vector.load %arg5[%c0_13, %c0_14] : memref<1x64xf32, #tpu.memory_space<vmem>>, vector<1x64xf32>
    %14 = arith.addf %12, %13 : vector<1x64xf32>
    %c0_15 = arith.constant 0 : index
    %c0_16 = arith.constant 0 : index
    %15 = vector.load %arg2[%c0_15, %c0_16] : memref<64x4xf32, #tpu.memory_space<vmem>>, vector<64x4xf32>
    %cst_17 = arith.constant dense<0.000000e+00> : vector<1x4xf32>
    %16 = tpu.matmul %4, %15, %cst_17 {dimension_numbers = #tpu.dot_dimension_numbers<[1], [0], [0], [1], [0, 0, 1, 1], [], []>} : vector<1x64xf32>, vector<64x4xf32>, vector<1x4xf32> -> vector<1x4xf32>
    %c0_18 = arith.constant 0 : index
    %c0_19 = arith.constant 0 : index
    %17 = vector.load %arg3[%c0_18, %c0_19] : memref<1x4xf32, #tpu.memory_space<vmem>>, vector<1x4xf32>
    %18 = arith.addf %16, %17 : vector<1x4xf32>
    %cst_20 = arith.constant 0.000000e+00 : f32
    %19 = vector.broadcast %cst_20 : f32 to vector<1x4xf32>
    %20 = arith.maximumf %18, %19 : vector<1x4xf32>
    %c0_21 = arith.constant 0 : index
    %c0_22 = arith.constant 0 : index
    %21 = vector.load %arg4[%c0_21, %c0_22] : memref<4x64xf32, #tpu.memory_space<vmem>>, vector<4x64xf32>
    %cst_23 = arith.constant dense<0.000000e+00> : vector<1x64xf32>
    %22 = tpu.matmul %20, %21, %cst_23 {dimension_numbers = #tpu.dot_dimension_numbers<[1], [0], [0], [1], [0, 0, 1, 1], [], []>} : vector<1x4xf32>, vector<4x64xf32>, vector<1x64xf32> -> vector<1x64xf32>
    %c0_24 = arith.constant 0 : index
    %c0_25 = arith.constant 0 : index
    %23 = vector.load %arg5[%c0_24, %c0_25] : memref<1x64xf32, #tpu.memory_space<vmem>>, vector<1x64xf32>
    %24 = arith.addf %22, %23 : vector<1x64xf32>
    %25 = arith.addf %14, %24 : vector<1x64xf32>
    %26 = arith.negf %25 : vector<1x64xf32>
    %27 = math.exp %26 : vector<1x64xf32>
    %cst_26 = arith.constant 1.000000e+00 : f32
    %28 = vector.broadcast %cst_26 : f32 to vector<1x64xf32>
    %29 = arith.addf %28, %27 : vector<1x64xf32>
    %30 = arith.divf %28, %29 : vector<1x64xf32>
    %c0_27 = arith.constant 0 : index
    %c0_28 = arith.constant 0 : index
    %c0_29 = arith.constant 0 : index
    %31 = vector.load %arg1[%c0_27, %c0_28, %c0_29] : memref<1x64x256xf32, #tpu.memory_space<vmem>>, vector<1x64x256xf32>
    %32 = vector.shape_cast %30 : vector<1x64xf32> to vector<1x64x1xf32>
    %33 = vector.broadcast %32 : vector<1x64x1xf32> to vector<1x64x256xf32>
    %34 = arith.mulf %31, %33 : vector<1x64x256xf32>
    %c0_30 = arith.constant 0 : index
    %c0_31 = arith.constant 0 : index
    %c0_32 = arith.constant 0 : index
    %35 = vector.load %arg6[%c0_30, %c0_31, %c0_32] : memref<1x64x256xf32, #tpu.memory_space<vmem>>, vector<1x64x256xf32>
    tpu.vector_store %arg6[%c0_30, %c0_31, %c0_32], %34 {strides = array<i32>} : memref<1x64x256xf32, #tpu.memory_space<vmem>>, vector<1x64x256xf32>,
    return
  }
  func.func @transform_0(%arg0: i32) -> (i32, i32, i32) {
    %c0_i32 = arith.constant 0 : i32
    %c0_i32_0 = arith.constant 0 : i32
    %c0_i32_1 = arith.constant 0 : i32
    return %arg0, %c0_i32, %c0_i32_0 : i32, i32, i32
  }
  func.func @transform_1(%arg0: i32) -> (i32, i32) {
    %c0_i32 = arith.constant 0 : i32
    %c0_i32_0 = arith.constant 0 : i32
    %c0_i32_1 = arith.constant 0 : i32
    return %c0_i32, %c0_i32_0 : i32, i32
  }
  func.func @transform_2(%arg0: i32) -> (i32, i32) {
    %c0_i32 = arith.constant 0 : i32
    %c0_i32_0 = arith.constant 0 : i32
    %c0_i32_1 = arith.constant 0 : i32
    return %c0_i32, %c0_i32_0 : i32, i32
  }
  func.func @transform_3(%arg0: i32) -> (i32, i32) {
    %c0_i32 = arith.constant 0 : i32
    %c0_i32_0 = arith.constant 0 : i32
    %c0_i32_1 = arith.constant 0 : i32
    return %c0_i32, %c0_i32_0 : i32, i32
  }
  func.func @transform_4(%arg0: i32) -> (i32, i32) {
    %c0_i32 = arith.constant 0 : i32
    %c0_i32_0 = arith.constant 0 : i32
    %c0_i32_1 = arith.constant 0 : i32
    return %c0_i32, %c0_i32_0 : i32, i32
  }
  func.func @transform_5(%arg0: i32) -> (i32, i32, i32) {
    %c0_i32 = arith.constant 0 : i32
    %c0_i32_0 = arith.constant 0 : i32
    %c0_i32_1 = arith.constant 0 : i32
    return %arg0, %c0_i32, %c0_i32_0 : i32, i32, i32
  }
}

</mosaic_0001>

<llo_original>
// kernel: tpu_custom_call.1
$region0: #{tpu_custom_call.1}
  #allocation0 [shape = 'u32[]', space=smem, size = 0x4, offset = 0x4, fixed_abs, tag = 'smem constant byte address 0x4 - core index']
  #allocation1 [shape = 'u32[144,128]{1,0:T(1,128)}', space=vmem, size = 0x12000, scoped, tag = 'internal scratch']
  %s0 = inlined_call_operand.hbm [shape: f32[2,64,256], index: 0, kind: input, shape index: {}]
  %s1 = inlined_call_operand.vmem [shape: f32[64,4], index: 1, kind: input, shape index: {}]
  %s2 = inlined_call_operand.vmem [shape: f32[1,4], index: 2, kind: input, shape index: {}]
  %s3 = inlined_call_operand.vmem [shape: f32[4,64], index: 3, kind: input, shape index: {}]
  %s4 = inlined_call_operand.vmem [shape: f32[1,64], index: 4, kind: input, shape index: {}]
  %s5 = inlined_call_operand.hbm [shape: f32[2,64,256], index: 5, kind: output, shape index: {}]
  %s6 = sld [smem:[#allocation0]]
  $region57: #{tpu_custom_call.1} parent=0
    _
  %s8 = ssub.s32 1, %s6
  %s9 = scalar_select 0, %s8, %s6
  $region1: #{tpu_custom_call.1} parent=0
    #allocation2 [shape = 'u8[131072]{0}', space=vmem, size = 0x20000, scoped, tag = 'input window, operand 0']
    #allocation3 [shape = 's32[2]{0}', space=sflag, size = 0x8, scoped, tag = 'scoped memory for tpu_custom_call.1']
    #allocation4 [shape = 's32[2]{0}', space=sflag, size = 0x8, scoped, tag = 'scoped memory for tpu_custom_call.1']
    #allocation5 [shape = 'u8[131072]{0}', space=vmem, size = 0x20000, scoped, tag = 'output window, operand 0']
    %10 = vsyncpa [#allocation3], 0
    %s11 = scalar_lea.sflag [#allocation3], 1
    %12 = vsyncpa %s11, 0
    %13 = vsyncpa [#allocation4], 0
    %s14 = scalar_lea.sflag [#allocation4], 1
    %15 = vsyncpa %s14, 0
    loop: start=0, step=1, limit=4
    $region2: #{tpu_custom_call.1} parent=1 // loop_pre_header
      _
    $region3: #{tpu_custom_call.1} parent=1 // loop_header
      %s17 = sphi 0, %s21
      %p18 = scmp.ge.s32.totalorder %s17, 4
      %s27 = sphi 0, %s29
      %s30 = sphi 0, %s27
      %s31 = sphi 0, %s30
      %s47 = sphi 0, %s31
      %s51 = sphi 0, %s51
      %s53 = sphi 0, %s51
      %s54 = sphi 0, %s53
      %s68 = sphi 0, %s54
      %s72 = sphi 0, %s72
      %s74 = sphi 0, %s72
      %s75 = sphi 0, %s74
      %s89 = sphi 0, %s75
      %s93 = sphi 0, %s93
      %s95 = sphi 0, %s93
      %s96 = sphi 0, %s95
      %s110 = sphi 0, %s96
      %s114 = sphi 0, %s114
      %s116 = sphi 0, %s114
      %s117 = sphi 0, %s116
      %s131 = sphi 0, %s117
      %s137 = sphi 0, %s139
      %s140 = sphi 0, %s137
      %s141 = sphi 0, %s140
      %s157 = sphi 0, %s141
    $region4: #{tpu_custom_call.1} parent=1 // loop_header_branch
      %20 = sbr.rel (%p18) target = $region8
    $region5: #{tpu_custom_call.1} parent=1 // loop_body
      %s22 = ssub.s32 %s17, 1
      %s23 = ssub.s32 %s17, 2
      %s24 = sadd.s32 %s17, 1
      %s25 = ssub.s32 %s17, %s24
      %p26 = scmp.eq.s32.totalorder %s25, 0
      %s28 = sadd.s32 %s27, 1
      %s29 = scalar_select %p26, %s27, %s28
      %p32 = pneg %p26
      %p33 = scmp.eq.s32.totalorder %s17, 1
      %p34 = por %p32, %p33
      %p35 = scmp.ne.s32.totalorder %s27, %s30
      %p36 = scmp.eq.s32.totalorder %s17, 0
      %p37 = por %p35, %p36
      %p38 = scmp.ne.s32.totalorder %s27, %s30
      %p39 = scmp.eq.s32.totalorder %s22, 1
      %p40 = por %p38, %p39
      %p41 = scmp.ne.s32.totalorder %s30, %s31
      %p42 = scmp.eq.s32.totalorder %s22, 0
      %p43 = por %p41, %p42
      %p44 = scmp.ne.s32.totalorder %s30, %s31
      %p45 = scmp.eq.s32.totalorder %s23, 1
      %p46 = por %p44, %p45
      %p48 = scmp.ne.s32.totalorder %s31, %s47
      %p49 = scmp.eq.s32.totalorder %s23, 0
      %p50 = por %p48, %p49
      %s52 = sadd.s32 %s51, 1
      %p55 = scmp.eq.s32.totalorder %s17, 1
      %p56 = scmp.ne.s32.totalorder %s51, %s53
      %p57 = scmp.eq.s32.totalorder %s17, 0
      %p58 = por %p56, %p57
      %p59 = scmp.ne.s32.totalorder %s51, %s53
      %p60 = scmp.eq.s32.totalorder %s22, 1
      %p61 = por %p59, %p60
      %p62 = scmp.ne.s32.totalorder %s53, %s54
      %p63 = scmp.eq.s32.totalorder %s22, 0
      %p64 = por %p62, %p63
      %p65 = scmp.ne.s32.totalorder %s53, %s54
      %p66 = scmp.eq.s32.totalorder %s23, 1
      %p67 = por %p65, %p66
      %p69 = scmp.ne.s32.totalorder %s54, %s68
      %p70 = scmp.eq.s32.totalorder %s23, 0
      %p71 = por %p69, %p70
      %s73 = sadd.s32 %s72, 1
      %p76 = scmp.eq.s32.totalorder %s17, 1
      %p77 = scmp.ne.s32.totalorder %s72, %s74
      %p78 = scmp.eq.s32.totalorder %s17, 0
      %p79 = por %p77, %p78
      %p80 = scmp.ne.s32.totalorder %s72, %s74
      %p81 = scmp.eq.s32.totalorder %s22, 1
      %p82 = por %p80, %p81
      %p83 = scmp.ne.s32.totalorder %s74, %s75
      %p84 = scmp.eq.s32.totalorder %s22, 0
      %p85 = por %p83, %p84
      %p86 = scmp.ne.s32.totalorder %s74, %s75
      %p87 = scmp.eq.s32.totalorder %s23, 1
      %p88 = por %p86, %p87
      %p90 = scmp.ne.s32.totalorder %s75, %s89
      %p91 = scmp.eq.s32.totalorder %s23, 0
      %p92 = por %p90, %p91
      %s94 = sadd.s32 %s93, 1
      %p97 = scmp.eq.s32.totalorder %s17, 1
      %p98 = scmp.ne.s32.totalorder %s93, %s95
      %p99 = scmp.eq.s32.totalorder %s17, 0
      %p100 = por %p98, %p99
      %p101 = scmp.ne.s32.totalorder %s93, %s95
      %p102 = scmp.eq.s32.totalorder %s22, 1
      %p103 = por %p101, %p102
      %p104 = scmp.ne.s32.totalorder %s95, %s96
      %p105 = scmp.eq.s32.totalorder %s22, 0
      %p106 = por %p104, %p105
      %p107 = scmp.ne.s32.totalorder %s95, %s96
      %p108 = scmp.eq.s32.totalorder %s23, 1
      %p109 = por %p107, %p108
      %p111 = scmp.ne.s32.totalorder %s96, %s110
      %p112 = scmp.eq.s32.totalorder %s23, 0
      %p113 = por %p111, %p112
      %s115 = sadd.s32 %s114, 1
      %p118 = scmp.eq.s32.totalorder %s17, 1
      %p119 = scmp.ne.s32.totalorder %s114, %s116
      %p120 = scmp.eq.s32.totalorder %s17, 0
      %p121 = por %p119, %p120
      %p122 = scmp.ne.s32.totalorder %s114, %s116
      %p123 = scmp.eq.s32.totalorder %s22, 1
      %p124 = por %p122, %p123
      %p125 = scmp.ne.s32.totalorder %s116, %s117
      %p126 = scmp.eq.s32.totalorder %s22, 0
      %p127 = por %p125, %p126
      %p128 = scmp.ne.s32.totalorder %s116, %s117
      %p129 = scmp.eq.s32.totalorder %s23, 1
      %p130 = por %p128, %p129
      %p132 = scmp.ne.s32.totalorder %s117, %s131
      %p133 = scmp.eq.s32.totalorder %s23, 0
      %p134 = por %p132, %p133
      %s135 = ssub.s32 %s17, %s24
      %p136 = scmp.eq.s32.totalorder %s135, 0
      %s138 = sadd.s32 %s137, 1
      %s139 = scalar_select %p136, %s137, %s138
      %p142 = pneg %p136
      %p143 = scmp.eq.s32.totalorder %s17, 1
      %p144 = por %p142, %p143
      %p145 = scmp.ne.s32.totalorder %s137, %s140
      %p146 = scmp.eq.s32.totalorder %s17, 0
      %p147 = por %p145, %p146
      %p148 = scmp.ne.s32.totalorder %s137, %s140
      %p149 = scmp.eq.s32.totalorder %s22, 1
      %p150 = por %p148, %p149
      %p151 = scmp.ne.s32.totalorder %s140, %s141
      %p152 = scmp.eq.s32.totalorder %s22, 0
      %p153 = por %p151, %p152
      %p154 = scmp.ne.s32.totalorder %s140, %s141
      %p155 = scmp.eq.s32.totalorder %s23, 1
      %p156 = por %p154, %p155
      %p158 = scmp.ne.s32.totalorder %s141, %s157
      %p159 = scmp.eq.s32.totalorder %s23, 0
      %p160 = por %p158, %p159
      %p161 = scmp.le.s32.totalorder 1, %s17
      %p162 = scmp.lt.s32.totalorder %s17, 3
      %p163 = pnand %p161, %p162
      %p164 = pneg %p163
      // Predicated region
      $region9: #{tpu_custom_call.1} parent=5 // pred_check
        _
      $region10: #{tpu_custom_call.1} parent=5 // pred_check_branch
        %166 = sbr.rel (%p163) target = $region12
      $region11: #{tpu_custom_call.1} parent=5 // pred_region
        %s167 = ssub.s32 %s17, 1
        // Predicated region
        $region13: #{tpu_custom_call.1} parent=11 // pred_check
          %p168 = pneg %p64
        $region14: #{tpu_custom_call.1} parent=11 // pred_check_branch
          %170 = sbr.rel (%p168) target = $region16
        $region15: #{tpu_custom_call.1} parent=11 // pred_region
          _
        $region16: #{tpu_custom_call.1} parent=11 // pred_fallthru
          _
        // Predicated region
        $region17: #{tpu_custom_call.1} parent=11 // pred_check
          %p171 = pneg %p85
        $region18: #{tpu_custom_call.1} parent=11 // pred_check_branch
          %173 = sbr.rel (%p171) target = $region20
        $region19: #{tpu_custom_call.1} parent=11 // pred_region
          _
        $region20: #{tpu_custom_call.1} parent=11 // pred_fallthru
          _
        // Predicated region
        $region21: #{tpu_custom_call.1} parent=11 // pred_check
          %p174 = pneg %p106
        $region22: #{tpu_custom_call.1} parent=11 // pred_check_branch
          %176 = sbr.rel (%p174) target = $region24
        $region23: #{tpu_custom_call.1} parent=11 // pred_region
          _
        $region24: #{tpu_custom_call.1} parent=11 // pred_fallthru
          _
        // Predicated region
        $region25: #{tpu_custom_call.1} parent=11 // pred_check
          %p177 = pneg %p127
        $region26: #{tpu_custom_call.1} parent=11 // pred_check_branch
          %179 = sbr.rel (%p177) target = $region28
        $region27: #{tpu_custom_call.1} parent=11 // pred_region
          _
        $region28: #{tpu_custom_call.1} parent=11 // pred_fallthru
          _
      $region12: #{tpu_custom_call.1} parent=5 // pred_fallthru
        _
      %p180 = scmp.lt.s32.totalorder %s17, 2
      // Predicated region
      $region29: #{tpu_custom_call.1} parent=5 // pred_check
        %p181 = pneg %p180
      $region30: #{tpu_custom_call.1} parent=5 // pred_check_branch
        %183 = sbr.rel (%p181) target = $region32
      $region31: #{tpu_custom_call.1} parent=5 // pred_region
        // Predicated region
        $region33: #{tpu_custom_call.1} parent=31 // pred_check
          %p184 = pneg %p37
        $region34: #{tpu_custom_call.1} parent=31 // pred_check_branch
          %186 = sbr.rel (%p184) target = $region36
        $region35: #{tpu_custom_call.1} parent=31 // pred_region
          %s187 = sand.u32 %s27, 1
          %s188 = scalar_lea.sflag [#allocation3], %s187
          %s189 = sand.u32 %s27, 1
          %s190 = smul.addr %s189, 128
          %s191 = scalar_lea.vmem [#allocation2], %s190
          %s193 = ssub.s32 2048, 2048
          %194 = vsyncadd %s188, %s193
          %s195 = smul.addr %s17, 16
          %s196 = smul.addr %s195, 128
          %s197 = scalar_lea.hbm %s0, %s196
          %s198 = sshll.u32 %s191, 4
          %s199 = int_to_ptr.vmem [resolvable:$true] %s198
          %204 = dma.hbm_to_vmem [thread:$0]  %s197, 2048, %s199, %s188, 256, 256, 16
        $region36: #{tpu_custom_call.1} parent=31 // pred_fallthru
          _
      $region32: #{tpu_custom_call.1} parent=5 // pred_fallthru
        _
      %p205 = scmp.le.s32.totalorder 1, %s17
      %p206 = scmp.lt.s32.totalorder %s17, 3
      %p207 = pnand %p205, %p206
      %p208 = pneg %p207
      // Predicated region
      $region37: #{tpu_custom_call.1} parent=5 // pred_check
        _
      $region38: #{tpu_custom_call.1} parent=5 // pred_check_branch
        %210 = sbr.rel (%p207) target = $region40
      $region39: #{tpu_custom_call.1} parent=5 // pred_region
        %s211 = ssub.s32 %s17, 1
        %s212 = sand.u32 %s30, 1
        %s213 = scalar_lea.sflag [#allocation3], %s212
        %s214 = sand.u32 %s30, 1
        %s215 = smul.addr %s214, 128
        %s216 = scalar_lea.vmem [#allocation2], %s215
        // Predicated region
        $region41: #{tpu_custom_call.1} parent=39 // pred_check
          %p217 = pneg %p43
        $region42: #{tpu_custom_call.1} parent=39 // pred_check_branch
          %219 = sbr.rel (%p217) target = $region44
        $region43: #{tpu_custom_call.1} parent=39 // pred_region
          %220 = dma.done %s213, 2048
        $region44: #{tpu_custom_call.1} parent=39 // pred_fallthru
          _
        %s221 = sand.u32 %s30, 1
        %s222 = scalar_lea.sflag [#allocation3], %s221
        %s223 = sand.u32 %s30, 1
        %s224 = smul.addr %s223, 128
        %s225 = scalar_lea.vmem [#allocation2], %s224
        %p226 = pneg %p43
        %p227 = pneg %p40
        %p228 = pneg %p64
        %p229 = pneg %p61
        %p230 = pneg %p85
        %p231 = pneg %p82
        %p232 = pneg %p106
        %p233 = pneg %p103
        %p234 = pneg %p127
        %p235 = pneg %p124
        %p236 = pneg %p153
        %p237 = pneg %p150
        %s238 = sand.u32 %s140, 1
        %s239 = scalar_lea.sflag [#allocation4], %s238
        %s240 = sand.u32 %s140, 1
        %s241 = smul.addr %s240, 128
        %s242 = scalar_lea.vmem [#allocation5], %s241
        %v243 = vld [vmem:[%s216] sm:$0xff]
        %v244 = vld [vmem:[%s216 + $0x8] sm:$0xff]
        %v245 = vld [vmem:[%s216 + $0x10] sm:$0xff]
        %v246 = vld [vmem:[%s216 + $0x18] sm:$0xff]
        %v247 = vld [vmem:[%s216 + $0x20] sm:$0xff]
        %v248 = vld [vmem:[%s216 + $0x28] sm:$0xff]
        %v249 = vld [vmem:[%s216 + $0x30] sm:$0xff]
        %v250 = vld [vmem:[%s216 + $0x38] sm:$0xff]
        %v251 = vld [vmem:[%s216 + $0x40] sm:$0xff]
        %v252 = vld [vmem:[%s216 + $0x48] sm:$0xff]
        %v253 = vld [vmem:[%s216 + $0x50] sm:$0xff]
        %v254 = vld [vmem:[%s216 + $0x58] sm:$0xff]
        %v255 = vld [vmem:[%s216 + $0x60] sm:$0xff]
        %v256 = vld [vmem:[%s216 + $0x68] sm:$0xff]
        %v257 = vld [vmem:[%s216 + $0x70] sm:$0xff]
        %v258 = vld [vmem:[%s216 + $0x78] sm:$0xff]
        %v259 = vadd.f32 %v243, %v244
        %260 = vadd.xlane.f32.xlu0 %v259
        %v261 = vpop.xlane.xlu0 %260
        %v262 = vadd.f32 %v245, %v246
        %263 = vadd.xlane.f32.xlu0 %v262
        %v264 = vpop.xlane.xlu0 %263
        %v265 = vadd.f32 %v247, %v248
        %266 = vadd.xlane.f32.xlu0 %v265
        %v267 = vpop.xlane.xlu0 %266
        %v268 = vadd.f32 %v249, %v250
        %269 = vadd.xlane.f32.xlu0 %v268
        %v270 = vpop.xlane.xlu0 %269
        %v271 = vadd.f32 %v251, %v252
        %272 = vadd.xlane.f32.xlu0 %v271
        %v273 = vpop.xlane.xlu0 %272
        %v274 = vadd.f32 %v253, %v254
        %275 = vadd.xlane.f32.xlu0 %v274
        %v276 = vpop.xlane.xlu0 %275
        %v277 = vadd.f32 %v255, %v256
        %278 = vadd.xlane.f32.xlu0 %v277
        %v279 = vpop.xlane.xlu0 %278
        %v280 = vadd.f32 %v257, %v258
        %281 = vadd.xlane.f32.xlu0 %v280
        %v282 = vpop.xlane.xlu0 %281
        %v283 = vmul.f32 %v261, 0.00390625
        %v284 = vmul.f32 %v264, 0.00390625
        %v285 = vmul.f32 %v267, 0.00390625
        %v286 = vmul.f32 %v270, 0.00390625
        %v287 = vmul.f32 %v273, 0.00390625
        %v288 = vmul.f32 %v276, 0.00390625
        %v289 = vmul.f32 %v279, 0.00390625
        %v290 = vmul.f32 %v282, 0.00390625
        %v291 = vmax.f32 %v243, %v244
        %292 = vmax.xlane.f32.xlu0 %v291
        %v293 = vpop.xlane.xlu0 %292
        %v294 = vmax.f32 %v245, %v246
        %295 = vmax.xlane.f32.xlu0 %v294
        %v296 = vpop.xlane.xlu0 %295
        %v297 = vmax.f32 %v247, %v248
        %298 = vmax.xlane.f32.xlu0 %v297
        %v299 = vpop.xlane.xlu0 %298
        %v300 = vmax.f32 %v249, %v250
        %301 = vmax.xlane.f32.xlu0 %v300
        %v302 = vpop.xlane.xlu0 %301
        %v303 = vmax.f32 %v251, %v252
        %304 = vmax.xlane.f32.xlu0 %v303
        %v305 = vpop.xlane.xlu0 %304
        %v306 = vmax.f32 %v253, %v254
        %307 = vmax.xlane.f32.xlu0 %v306
        %v308 = vpop.xlane.xlu0 %307
        %v309 = vmax.f32 %v255, %v256
        %310 = vmax.xlane.f32.xlu0 %v309
        %v311 = vpop.xlane.xlu0 %310
        %v312 = vmax.f32 %v257, %v258
        %313 = vmax.xlane.f32.xlu0 %v312
        %v314 = vpop.xlane.xlu0 %313
        %v315 = vld [vmem:[%s1] sm:$0xff]
        %v316 = vld [vmem:[%s1 + $0x8] sm:$0xff]
        %v317 = vld [vmem:[%s1 + $0x10] sm:$0xff]
        %v318 = vld [vmem:[%s1 + $0x18] sm:$0xff]
        %v319 = vld [vmem:[%s1 + $0x20] sm:$0xff]
        %v320 = vld [vmem:[%s1 + $0x28] sm:$0xff]
        %v321 = vld [vmem:[%s1 + $0x30] sm:$0xff]
        %v322 = vld [vmem:[%s1 + $0x38] sm:$0xff]
        %v323 = vld [vmem:[%s2] sm:$0x1]
        %v332 = vlaneseq
        %v333 = vand.u32 %v332, 127
        %v334 = vlaneseq
        %v335 = vshrl.u32 %v334, 7
        %v336 = vsub.s32 %v333, %v335
        %v337 = vrot.slane %v283, %v336
        %v338 = vadd.s32 %v333, 4294967288
        %v339 = vlaneseq
        %v340 = vshrl.u32 %v339, 7
        %v341 = vsub.s32 %v338, %v340
        %v342 = vrot.slane %v284, %v341
        %vm343 = vcmask 130112
        %v344 = vsel %vm343, %v342, %v337
        %v345 = vadd.s32 %v333, 4294967280
        %v346 = vlaneseq
        %v347 = vshrl.u32 %v346, 7
        %v348 = vsub.s32 %v345, %v347
        %v349 = vrot.slane %v285, %v348
        %vm350 = vcmask 195712
        %v351 = vsel %vm350, %v349, %v344
        %v352 = vadd.s32 %v333, 4294967272
        %v353 = vlaneseq
        %v354 = vshrl.u32 %v353, 7
        %v355 = vsub.s32 %v352, %v354
        %v356 = vrot.slane %v286, %v355
        %vm357 = vcmask 261312
        %v358 = vsel %vm357, %v356, %v351
        %v359 = vadd.s32 %v333, 4294967264
        %v360 = vlaneseq
        %v361 = vshrl.u32 %v360, 7
        %v362 = vsub.s32 %v359, %v361
        %v363 = vrot.slane %v287, %v362
        %vm364 = vcmask 326912
        %v365 = vsel %vm364, %v363, %v358
        %v366 = vadd.s32 %v333, 4294967256
        %v367 = vlaneseq
        %v368 = vshrl.u32 %v367, 7
        %v369 = vsub.s32 %v366, %v368
        %v370 = vrot.slane %v288, %v369
        %vm371 = vcmask 392512
        %v372 = vsel %vm371, %v370, %v365
        %v373 = vadd.s32 %v333, 4294967248
        %v374 = vlaneseq
        %v375 = vshrl.u32 %v374, 7
        %v376 = vsub.s32 %v373, %v375
        %v377 = vrot.slane %v289, %v376
        %vm378 = vcmask 458112
        %v379 = vsel %vm378, %v377, %v372
        %v380 = vadd.s32 %v333, 4294967240
        %v381 = vlaneseq
        %v382 = vshrl.u32 %v381, 7
        %v383 = vsub.s32 %v380, %v382
        %v384 = vrot.slane %v290, %v383
        %vm385 = vcmask 523712
        %v386 = vsel %vm385, %v384, %v379
        %vm387 = vcmask 523264
        %v388 = vsel %vm387, %v386, 0
        %390 = vmatprep.subr.mxu0 0.0
        %391 = vmatpush1.msra.mxu0 0.0
        %392 = vmatprep.subr.mxu0 0.0
        %393 = vmatpush1.msra.mxu0 0.0
        %394 = vmatprep.subr.mxu0 0.0
        %395 = vmatpush1.msra.mxu0 0.0
        %396 = vmatprep.subr.mxu0 0.0
        %397 = vmatpush1.msra.mxu0 0.0
        %398 = vmatprep.subr.mxu0 0.0
        %399 = vmatpush1.msra.mxu0 0.0
        %400 = vmatprep.subr.mxu0 0.0
        %401 = vmatpush1.msra.mxu0 0.0
        %402 = vmatprep.subr.mxu0 0.0
        %403 = vmatpush1.msra.mxu0 0.0
        %404 = vmatprep.subr.mxu0 0.0
        %405 = vmatpush1.msra.mxu0 0.0
        %406 = vmatprep.subr.mxu0 0.0
        %407 = vmatpush1.msra.mxu0 %v322
        %408 = vmatprep.subr.mxu0 0.0
        %409 = vmatpush1.msra.mxu0 %v321
        %410 = vmatprep.subr.mxu0 0.0
        %411 = vmatpush1.msra.mxu0 %v320
        %412 = vmatprep.subr.mxu0 0.0
        %413 = vmatpush1.msra.mxu0 %v319
        %414 = vmatprep.subr.mxu0 0.0
        %415 = vmatpush1.msra.mxu0 %v318
        %416 = vmatprep.subr.mxu0 0.0
        %417 = vmatpush1.msra.mxu0 %v317
        %418 = vmatprep.subr.mxu0 0.0
        %419 = vmatpush1.msra.mxu0 %v316
        %420 = vmatprep.subr.mxu0 0.0
        %421 = vmatpush1.msra.mxu0 %v315
        %422 = vmatprep.subr.mxu0 0.0
        %423 = vmatpush2.msra.mxu0 0.0
        %424 = vmatprep.subr.mxu0 0.0
        %425 = vmatpush2.msra.mxu0 0.0
        %426 = vmatprep.subr.mxu0 0.0
        %427 = vmatpush2.msra.mxu0 0.0
        %428 = vmatprep.subr.mxu0 0.0
        %429 = vmatpush2.msra.mxu0 0.0
        %430 = vmatprep.subr.mxu0 0.0
        %431 = vmatpush2.msra.mxu0 0.0
        %432 = vmatprep.subr.mxu0 0.0
        %433 = vmatpush2.msra.mxu0 0.0
        %434 = vmatprep.subr.mxu0 0.0
        %435 = vmatpush2.msra.mxu0 0.0
        %436 = vmatprep.subr.mxu0 0.0
        %437 = vmatpush2.msra.mxu0 0.0
        %438 = vmatprep.subr.mxu0 0.0
        %439 = vmatpush2.msra.mxu0 0.0
        %440 = vmatprep.subr.mxu0 0.0
        %441 = vmatpush2.msra.mxu0 0.0
        %442 = vmatprep.subr.mxu0 0.0
        %443 = vmatpush2.msra.mxu0 0.0
        %444 = vmatprep.subr.mxu0 0.0
        %445 = vmatpush2.msra.mxu0 0.0
        %446 = vmatprep.subr.mxu0 0.0
        %447 = vmatpush2.msra.mxu0 0.0
        %448 = vmatprep.subr.mxu0 0.0
        %449 = vmatpush2.msra.mxu0 0.0
        %450 = vmatprep.subr.mxu0 0.0
        %451 = vmatpush2.msra.mxu0 0.0
        %452 = vmatprep.subr.mxu0 0.0
        %453 = vmatpush2.msra.mxu0 0.0
        %454 = vmatprep.mubr.f32.mxu0 0.0
        %455 = vmatmul.mubr.f32.gmra.mxu0 %v388
        %v456 = vpop.f32.mrf.mxu0
        %v457 = vadd.f32 %v323, %v456
        %v458 = vpop.f32.mrf.mxu0
        %459 = vdwg.mxu0
        %v460 = vmax.f32 %v457, 0.0
        %v461 = vld [vmem:[%s3] sm:$0xf]
        %v462 = vld [vmem:[%s4] sm:$0x1]
        %vm463 = vcmask 31744
        %v465 = vsel %vm463, %v460, 0
        %vm467 = vcmask 1043456
        %v469 = vsel %vm467, %v461, 0
        %471 = vmatprep.subr.mxu0 0.0
        %472 = vmatpush1.msra.mxu0 0.0
        %473 = vmatprep.subr.mxu0 0.0
        %474 = vmatpush1.msra.mxu0 0.0
        %475 = vmatprep.subr.mxu0 0.0
        %476 = vmatpush1.msra.mxu0 0.0
        %477 = vmatprep.subr.mxu0 0.0
        %478 = vmatpush1.msra.mxu0 0.0
        %479 = vmatprep.subr.mxu0 0.0
        %480 = vmatpush1.msra.mxu0 0.0
        %481 = vmatprep.subr.mxu0 0.0
        %482 = vmatpush1.msra.mxu0 0.0
        %483 = vmatprep.subr.mxu0 0.0
        %484 = vmatpush1.msra.mxu0 0.0
        %485 = vmatprep.subr.mxu0 0.0
        %486 = vmatpush1.msra.mxu0 0.0
        %487 = vmatprep.subr.mxu0 0.0
        %488 = vmatpush1.msra.mxu0 0.0
        %489 = vmatprep.subr.mxu0 0.0
        %490 = vmatpush1.msra.mxu0 0.0
        %491 = vmatprep.subr.mxu0 0.0
        %492 = vmatpush1.msra.mxu0 0.0
        %493 = vmatprep.subr.mxu0 0.0
        %494 = vmatpush1.msra.mxu0 0.0
        %495 = vmatprep.subr.mxu0 0.0
        %496 = vmatpush1.msra.mxu0 0.0
        %497 = vmatprep.subr.mxu0 0.0
        %498 = vmatpush1.msra.mxu0 0.0
        %499 = vmatprep.subr.mxu0 0.0
        %500 = vmatpush1.msra.mxu0 0.0
        %501 = vmatprep.subr.mxu0 0.0
        %502 = vmatpush1.msra.mxu0 %v469
        %503 = vmatprep.subr.mxu0 0.0
        %504 = vmatpush2.msra.mxu0 0.0
        %505 = vmatprep.subr.mxu0 0.0
        %506 = vmatpush2.msra.mxu0 0.0
        %507 = vmatprep.subr.mxu0 0.0
        %508 = vmatpush2.msra.mxu0 0.0
        %509 = vmatprep.subr.mxu0 0.0
        %510 = vmatpush2.msra.mxu0 0.0
        %511 = vmatprep.subr.mxu0 0.0
        %512 = vmatpush2.msra.mxu0 0.0
        %513 = vmatprep.subr.mxu0 0.0
        %514 = vmatpush2.msra.mxu0 0.0
        %515 = vmatprep.subr.mxu0 0.0
        %516 = vmatpush2.msra.mxu0 0.0
        %517 = vmatprep.subr.mxu0 0.0
        %518 = vmatpush2.msra.mxu0 0.0
        %519 = vmatprep.subr.mxu0 0.0
        %520 = vmatpush2.msra.mxu0 0.0
        %521 = vmatprep.subr.mxu0 0.0
        %522 = vmatpush2.msra.mxu0 0.0
        %523 = vmatprep.subr.mxu0 0.0
        %524 = vmatpush2.msra.mxu0 0.0
        %525 = vmatprep.subr.mxu0 0.0
        %526 = vmatpush2.msra.mxu0 0.0
        %527 = vmatprep.subr.mxu0 0.0
        %528 = vmatpush2.msra.mxu0 0.0
        %529 = vmatprep.subr.mxu0 0.0
        %530 = vmatpush2.msra.mxu0 0.0
        %531 = vmatprep.subr.mxu0 0.0
        %532 = vmatpush2.msra.mxu0 0.0
        %533 = vmatprep.subr.mxu0 0.0
        %534 = vmatpush2.msra.mxu0 0.0
        %535 = vmatprep.mubr.f32.mxu0 0.0
        %536 = vmatmul.mubr.f32.gmra.mxu0 %v465
        %v537 = vpop.f32.mrf.mxu0
        %v538 = vadd.f32 %v462, %v537
        %v539 = vpop.f32.mrf.mxu0
        %540 = vdwg.mxu0
        %v549 = vlaneseq
        %v550 = vshrl.u32 %v549, 7
        %v551 = vsub.s32 %v333, %v550
        %v552 = vrot.slane %v293, %v551
        %v553 = vlaneseq
        %v554 = vshrl.u32 %v553, 7
        %v555 = vsub.s32 %v338, %v554
        %v556 = vrot.slane %v296, %v555
        %v557 = vsel %vm343, %v556, %v552
        %v558 = vlaneseq
        %v559 = vshrl.u32 %v558, 7
        %v560 = vsub.s32 %v345, %v559
        %v561 = vrot.slane %v299, %v560
        %v562 = vsel %vm350, %v561, %v557
        %v563 = vlaneseq
        %v564 = vshrl.u32 %v563, 7
        %v565 = vsub.s32 %v352, %v564
        %v566 = vrot.slane %v302, %v565
        %v567 = vsel %vm357, %v566, %v562
        %v568 = vlaneseq
        %v569 = vshrl.u32 %v568, 7
        %v570 = vsub.s32 %v359, %v569
        %v571 = vrot.slane %v305, %v570
        %v572 = vsel %vm364, %v571, %v567
        %v573 = vlaneseq
        %v574 = vshrl.u32 %v573, 7
        %v575 = vsub.s32 %v366, %v574
        %v576 = vrot.slane %v308, %v575
        %v577 = vsel %vm371, %v576, %v572
        %v578 = vlaneseq
        %v579 = vshrl.u32 %v578, 7
        %v580 = vsub.s32 %v373, %v579
        %v581 = vrot.slane %v311, %v580
        %v582 = vsel %vm378, %v581, %v577
        %v583 = vlaneseq
        %v584 = vshrl.u32 %v583, 7
        %v585 = vsub.s32 %v380, %v584
        %v586 = vrot.slane %v314, %v585
        %v587 = vsel %vm385, %v586, %v582
        %v588 = vsel %vm387, %v587, 0
        %590 = vmatprep.subr.mxu0 0.0
        %591 = vmatpush1.msra.mxu0 0.0
        %592 = vmatprep.subr.mxu0 0.0
        %593 = vmatpush1.msra.mxu0 0.0
        %594 = vmatprep.subr.mxu0 0.0
        %595 = vmatpush1.msra.mxu0 0.0
        %596 = vmatprep.subr.mxu0 0.0
        %597 = vmatpush1.msra.mxu0 0.0
        %598 = vmatprep.subr.mxu0 0.0
        %599 = vmatpush1.msra.mxu0 0.0
        %600 = vmatprep.subr.mxu0 0.0
        %601 = vmatpush1.msra.mxu0 0.0
        %602 = vmatprep.subr.mxu0 0.0
        %603 = vmatpush1.msra.mxu0 0.0
        %604 = vmatprep.subr.mxu0 0.0
        %605 = vmatpush1.msra.mxu0 0.0
        %606 = vmatprep.subr.mxu0 0.0
        %607 = vmatpush1.msra.mxu0 %v322
        %608 = vmatprep.subr.mxu0 0.0
        %609 = vmatpush1.msra.mxu0 %v321
        %610 = vmatprep.subr.mxu0 0.0
        %611 = vmatpush1.msra.mxu0 %v320
        %612 = vmatprep.subr.mxu0 0.0
        %613 = vmatpush1.msra.mxu0 %v319
        %614 = vmatprep.subr.mxu0 0.0
        %615 = vmatpush1.msra.mxu0 %v318
        %616 = vmatprep.subr.mxu0 0.0
        %617 = vmatpush1.msra.mxu0 %v317
        %618 = vmatprep.subr.mxu0 0.0
        %619 = vmatpush1.msra.mxu0 %v316
        %620 = vmatprep.subr.mxu0 0.0
        %621 = vmatpush1.msra.mxu0 %v315
        %622 = vmatprep.subr.mxu0 0.0
        %623 = vmatpush2.msra.mxu0 0.0
        %624 = vmatprep.subr.mxu0 0.0
        %625 = vmatpush2.msra.mxu0 0.0
        %626 = vmatprep.subr.mxu0 0.0
        %627 = vmatpush2.msra.mxu0 0.0
        %628 = vmatprep.subr.mxu0 0.0
        %629 = vmatpush2.msra.mxu0 0.0
        %630 = vmatprep.subr.mxu0 0.0
        %631 = vmatpush2.msra.mxu0 0.0
        %632 = vmatprep.subr.mxu0 0.0
        %633 = vmatpush2.msra.mxu0 0.0
        %634 = vmatprep.subr.mxu0 0.0
        %635 = vmatpush2.msra.mxu0 0.0
        %636 = vmatprep.subr.mxu0 0.0
        %637 = vmatpush2.msra.mxu0 0.0
        %638 = vmatprep.subr.mxu0 0.0
        %639 = vmatpush2.msra.mxu0 0.0
        %640 = vmatprep.subr.mxu0 0.0
        %641 = vmatpush2.msra.mxu0 0.0
        %642 = vmatprep.subr.mxu0 0.0
        %643 = vmatpush2.msra.mxu0 0.0
        %644 = vmatprep.subr.mxu0 0.0
        %645 = vmatpush2.msra.mxu0 0.0
        %646 = vmatprep.subr.mxu0 0.0
        %647 = vmatpush2.msra.mxu0 0.0
        %648 = vmatprep.subr.mxu0 0.0
        %649 = vmatpush2.msra.mxu0 0.0
        %650 = vmatprep.subr.mxu0 0.0
        %651 = vmatpush2.msra.mxu0 0.0
        %652 = vmatprep.subr.mxu0 0.0
        %653 = vmatpush2.msra.mxu0 0.0
        %654 = vmatprep.mubr.f32.mxu0 0.0
        %655 = vmatmul.mubr.f32.gmra.mxu0 %v588
        %v656 = vpop.f32.mrf.mxu0
        %v657 = vadd.f32 %v323, %v656
        %v658 = vpop.f32.mrf.mxu0
        %659 = vdwg.mxu0
        %v660 = vmax.f32 %v657, 0.0
        %v662 = vsel %vm463, %v660, 0
        %664 = vmatprep.subr.mxu0 0.0
        %665 = vmatpush1.msra.mxu0 0.0
        %666 = vmatprep.subr.mxu0 0.0
        %667 = vmatpush1.msra.mxu0 0.0
        %668 = vmatprep.subr.mxu0 0.0
        %669 = vmatpush1.msra.mxu0 0.0
        %670 = vmatprep.subr.mxu0 0.0
        %671 = vmatpush1.msra.mxu0 0.0
        %672 = vmatprep.subr.mxu0 0.0
        %673 = vmatpush1.msra.mxu0 0.0
        %674 = vmatprep.subr.mxu0 0.0
        %675 = vmatpush1.msra.mxu0 0.0
        %676 = vmatprep.subr.mxu0 0.0
        %677 = vmatpush1.msra.mxu0 0.0
        %678 = vmatprep.subr.mxu0 0.0
        %679 = vmatpush1.msra.mxu0 0.0
        %680 = vmatprep.subr.mxu0 0.0
        %681 = vmatpush1.msra.mxu0 0.0
        %682 = vmatprep.subr.mxu0 0.0
        %683 = vmatpush1.msra.mxu0 0.0
        %684 = vmatprep.subr.mxu0 0.0
        %685 = vmatpush1.msra.mxu0 0.0
        %686 = vmatprep.subr.mxu0 0.0
        %687 = vmatpush1.msra.mxu0 0.0
        %688 = vmatprep.subr.mxu0 0.0
        %689 = vmatpush1.msra.mxu0 0.0
        %690 = vmatprep.subr.mxu0 0.0
        %691 = vmatpush1.msra.mxu0 0.0
        %692 = vmatprep.subr.mxu0 0.0
        %693 = vmatpush1.msra.mxu0 0.0
        %694 = vmatprep.subr.mxu0 0.0
        %695 = vmatpush1.msra.mxu0 %v469
        %696 = vmatprep.subr.mxu0 0.0
        %697 = vmatpush2.msra.mxu0 0.0
        %698 = vmatprep.subr.mxu0 0.0
        %699 = vmatpush2.msra.mxu0 0.0
        %700 = vmatprep.subr.mxu0 0.0
        %701 = vmatpush2.msra.mxu0 0.0
        %702 = vmatprep.subr.mxu0 0.0
        %703 = vmatpush2.msra.mxu0 0.0
        %704 = vmatprep.subr.mxu0 0.0
        %705 = vmatpush2.msra.mxu0 0.0
        %706 = vmatprep.subr.mxu0 0.0
        %707 = vmatpush2.msra.mxu0 0.0
        %708 = vmatprep.subr.mxu0 0.0
        %709 = vmatpush2.msra.mxu0 0.0
        %710 = vmatprep.subr.mxu0 0.0
        %711 = vmatpush2.msra.mxu0 0.0
        %712 = vmatprep.subr.mxu0 0.0
        %713 = vmatpush2.msra.mxu0 0.0
        %714 = vmatprep.subr.mxu0 0.0
        %715 = vmatpush2.msra.mxu0 0.0
        %716 = vmatprep.subr.mxu0 0.0
        %717 = vmatpush2.msra.mxu0 0.0
        %718 = vmatprep.subr.mxu0 0.0
        %719 = vmatpush2.msra.mxu0 0.0
        %720 = vmatprep.subr.mxu0 0.0
        %721 = vmatpush2.msra.mxu0 0.0
        %722 = vmatprep.subr.mxu0 0.0
        %723 = vmatpush2.msra.mxu0 0.0
        %724 = vmatprep.subr.mxu0 0.0
        %725 = vmatpush2.msra.mxu0 0.0
        %726 = vmatprep.subr.mxu0 0.0
        %727 = vmatpush2.msra.mxu0 0.0
        %728 = vmatprep.mubr.f32.mxu0 0.0
        %729 = vmatmul.mubr.f32.gmra.mxu0 %v662
        %v730 = vpop.f32.mrf.mxu0
        %v731 = vadd.f32 %v462, %v730
        %v732 = vpop.f32.mrf.mxu0
        %733 = vdwg.mxu0
        %v734 = vadd.f32 %v538, %v731
        %v735 = vxor.u32 %v734, 2147483648
        %v736 = vmul.f32 %v735, 1.442695
        %v737 = vpow.pop %v736
        %v738 = vadd.f32 %v737, 1.0
        %v739 = vrcp.pop %v738
        %v740 = vmul.f32 1.0, %v739
        %v741 = vlaneseq
        %v742 = vshrl.u32 %v741, 7
        %v743 = vsub.s32 0, %v742
        %v744 = vrot.slane %v740, %v743
        %746 = vbcast.lane.b32.xlu0 %v744, 256
        %v747 = vpop.permute.xlu0 %746
        %s749 = sor.u32 256, 8
        %750 = vbcast.lane.b32.xlu0 %v744, %s749
        %v751 = vpop.permute.xlu0 %750
        %s753 = sor.u32 256, 16
        %754 = vbcast.lane.b32.xlu0 %v744, %s753
        %v755 = vpop.permute.xlu0 %754
        %s757 = sor.u32 256, 24
        %758 = vbcast.lane.b32.xlu0 %v744, %s757
        %v759 = vpop.permute.xlu0 %758
        %s761 = sor.u32 256, 32
        %762 = vbcast.lane.b32.xlu0 %v744, %s761
        %v763 = vpop.permute.xlu0 %762
        %s765 = sor.u32 256, 40
        %766 = vbcast.lane.b32.xlu0 %v744, %s765
        %v767 = vpop.permute.xlu0 %766
        %s769 = sor.u32 256, 48
        %770 = vbcast.lane.b32.xlu0 %v744, %s769
        %v771 = vpop.permute.xlu0 %770
        %s773 = sor.u32 256, 56
        %774 = vbcast.lane.b32.xlu0 %v744, %s773
        %v775 = vpop.permute.xlu0 %774
        %v776 = vmul.f32 %v243, %v747
        %v777 = vmul.f32 %v244, %v747
        %v778 = vmul.f32 %v245, %v751
        %v779 = vmul.f32 %v246, %v751
        %v780 = vmul.f32 %v247, %v755
        %v781 = vmul.f32 %v248, %v755
        %v782 = vmul.f32 %v249, %v759
        %v783 = vmul.f32 %v250, %v759
        %v784 = vmul.f32 %v251, %v763
        %v785 = vmul.f32 %v252, %v763
        %v786 = vmul.f32 %v253, %v767
        %v787 = vmul.f32 %v254, %v767
        %v788 = vmul.f32 %v255, %v771
        %v789 = vmul.f32 %v256, %v771
        %v790 = vmul.f32 %v257, %v775
        %v791 = vmul.f32 %v258, %v775
        %792 = vst [vmem:[%s242] sm:$0xff] %v776
        %793 = vst [vmem:[%s242 + $0x8] sm:$0xff] %v777
        %794 = vst [vmem:[%s242 + $0x10] sm:$0xff] %v778
        %795 = vst [vmem:[%s242 + $0x18] sm:$0xff] %v779
        %796 = vst [vmem:[%s242 + $0x20] sm:$0xff] %v780
        %797 = vst [vmem:[%s242 + $0x28] sm:$0xff] %v781
        %798 = vst [vmem:[%s242 + $0x30] sm:$0xff] %v782
        %799 = vst [vmem:[%s242 + $0x38] sm:$0xff] %v783
        %800 = vst [vmem:[%s242 + $0x40] sm:$0xff] %v784
        %801 = vst [vmem:[%s242 + $0x48] sm:$0xff] %v785
        %802 = vst [vmem:[%s242 + $0x50] sm:$0xff] %v786
        %803 = vst [vmem:[%s242 + $0x58] sm:$0xff] %v787
        %804 = vst [vmem:[%s242 + $0x60] sm:$0xff] %v788
        %805 = vst [vmem:[%s242 + $0x68] sm:$0xff] %v789
        %806 = vst [vmem:[%s242 + $0x70] sm:$0xff] %v790
        %807 = vst [vmem:[%s242 + $0x78] sm:$0xff] %v791
        %s808 = sand.u32 %s140, 1
        %s809 = scalar_lea.sflag [#allocation4], %s808
        %s810 = sand.u32 %s140, 1
        %s811 = smul.addr %s810, 128
        %s812 = scalar_lea.vmem [#allocation5], %s811
        // Predicated region
        $region45: #{tpu_custom_call.1} parent=39 // pred_check
          %p813 = pneg %p150
        $region46: #{tpu_custom_call.1} parent=39 // pred_check_branch
          %815 = sbr.rel (%p813) target = $region48
        $region47: #{tpu_custom_call.1} parent=39 // pred_region
          %s817 = ssub.s32 2048, 2048
          %818 = vsyncadd %s809, %s817
          %s819 = smul.addr %s22, 16
          %s820 = smul.addr %s819, 128
          %s821 = scalar_lea.hbm %s5, %s820
          %s822 = sshll.u32 %s812, 4
          %s823 = int_to_ptr.vmem [resolvable:$true] %s822
          %828 = dma.vmem_to_hbm [thread:$0]  %s823, 2048, %s821, %s809, 256, 256, 16
        $region48: #{tpu_custom_call.1} parent=39 // pred_fallthru
          _
      $region40: #{tpu_custom_call.1} parent=5 // pred_fallthru
        _
      %p829 = scmp.le.s32.totalorder 2, %s17
      // Predicated region
      $region49: #{tpu_custom_call.1} parent=5 // pred_check
        %p830 = pneg %p829
      $region50: #{tpu_custom_call.1} parent=5 // pred_check_branch
        %832 = sbr.rel (%p830) target = $region52
      $region51: #{tpu_custom_call.1} parent=5 // pred_region
        %s833 = ssub.s32 %s17, 2
        // Predicated region
        $region53: #{tpu_custom_call.1} parent=51 // pred_check
          %p834 = pneg %p156
        $region54: #{tpu_custom_call.1} parent=51 // pred_check_branch
          %836 = sbr.rel (%p834) target = $region56
        $region55: #{tpu_custom_call.1} parent=51 // pred_region
          %s837 = sand.u32 %s141, 1
          %s838 = scalar_lea.sflag [#allocation4], %s837
          %s839 = sand.u32 %s141, 1
          %s840 = smul.addr %s839, 128
          %s841 = scalar_lea.vmem [#allocation5], %s840
          %842 = dma.done %s838, 2048
        $region56: #{tpu_custom_call.1} parent=51 // pred_fallthru
          _
      $region52: #{tpu_custom_call.1} parent=5 // pred_fallthru
        _
    $region6: #{tpu_custom_call.1} parent=1 // loop_footer
      %s21 = sadd.s32 1, %s17
    $region7: #{tpu_custom_call.1} parent=1 // loop_footer_branch
      %16 = sbr.rel target = $region3
    $region8: #{tpu_custom_call.1} parent=1 // loop_exit
      _
    %843 = vsyncpa [#allocation3], 1
    %s844 = scalar_lea.sflag [#allocation3], 1
    %845 = vsyncpa %s844, 1
    %846 = vsyncpa [#allocation4], 1
    %s847 = scalar_lea.sflag [#allocation4], 1
    %848 = vsyncpa %s847, 1

</llo_original>
